<compile_context>
chip_gen: v7x
topology: tpu7x:2x2x1
jax: 0.10.0
libtpu: 0.0.40
codegen_flags: <defaults>
</compile_context>

<pallas_src>
import functools

import jax
import jax.numpy as jnp
from jax.experimental import pallas as pl
from jax.experimental.pallas import tpu as pltpu


_LANES = 128
# exp(-1e4) == 0 and max(-1e4, 0) == 0 in f32, so padded elements contribute
# exactly zero to every partial sum (targets are padded with 0).
_PAD_LOGIT = -1.0e4


def _round_up(a, b):
    return ((a + b - 1) // b) * b


def _bce_dice_partial_kernel(x_ref, t_ref,
                             bce_out, inter_out, psum_out, tsum_out,
                             *, rows_per_block):
    """Accumulates per-sample partial sums into (1, 8, 128) output slabs."""
    j = pl.program_id(1)

    # Output blocks stay resident across the row (reduction) axis: use them
    # directly as accumulators (init on first row block of each sample).
    @pl.when(j == 0)
    def _init():
        bce_out[...] = jnp.zeros_like(bce_out)
        inter_out[...] = jnp.zeros_like(inter_out)
        psum_out[...] = jnp.zeros_like(psum_out)
        tsum_out[...] = jnp.zeros_like(tsum_out)

    x = x_ref[0].astype(jnp.float32)          # (rows_per_block, 128)
    t = t_ref[0].astype(jnp.float32)

    # Numerically stable BCE-with-logits, reusing e = exp(-|x|) for sigmoid:
    #   bce = max(x, 0) - x*t + log1p(exp(-|x|))
    #   sigmoid(x) = where(x >= 0, 1, e) / (1 + e)
    e = jnp.exp(-jnp.abs(x))
    bce = jnp.maximum(x, 0.0) - x * t + jnp.log1p(e)
    p = jnp.where(x >= 0.0, 1.0, e) / (1.0 + e)

    def fold(v):
        # (rows, 128) -> (rows//8, 8, 128) -> sum over leading axis: pure
        # vreg-wise VPU adds (no XLU cross-lane reduce per step).
        return jnp.sum(
            v.reshape(rows_per_block // 8, 8, _LANES), axis=0)[None]

    bce_out[...] += fold(bce)
    inter_out[...] += fold(p * t)
    psum_out[...] += fold(p)
    tsum_out[...] += fold(t)


def bce_dice_loss(logits, targets):
    """BCEWithLogitsLoss(mean) + (1 - dice(sigmoid(logits), targets))."""
    n = logits.shape[0]
    x = logits.reshape(n, -1)
    t = targets.reshape(n, -1)
    d = x.shape[1]

    # Lane-dense per-sample layout: (rows, 128).
    rows = pl.cdiv(d, _LANES)

    # Sublane multiple required by the input tile (8 for f32, 16 bf16, 32 i8).
    min_itemsize = min(jnp.dtype(x.dtype).itemsize, jnp.dtype(t.dtype).itemsize)
    sub = max(8, 32 // max(int(min_itemsize), 1))

    # Big row blocks (<= ~1024 rows => 512 KiB f32 per input block; well within
    # the 64 MiB v7x VMEM budget even double-buffered for both inputs).
    target_rows = 1024
    num_blocks = pl.cdiv(rows, target_rows)
    rows_per_block = _round_up(pl.cdiv(rows, num_blocks), sub)
    rows_pad = num_blocks * rows_per_block
    d_pad = rows_pad * _LANES

    if d_pad != d:
        x = jnp.pad(x, ((0, 0), (0, d_pad - d)), constant_values=_PAD_LOGIT)
        t = jnp.pad(t, ((0, 0), (0, d_pad - d)))
    x3 = x.reshape(n, rows_pad, _LANES)
    t3 = t.reshape(n, rows_pad, _LANES)

    kernel = functools.partial(
        _bce_dice_partial_kernel, rows_per_block=rows_per_block)

    part_shape = jax.ShapeDtypeStruct((n, 8, _LANES), jnp.float32)
    in_spec = pl.BlockSpec((1, rows_per_block, _LANES), lambda i, j: (i, j, 0))
    out_spec = pl.BlockSpec((1, 8, _LANES), lambda i, j: (i, 0, 0))

    bce_part, inter_part, psum_part, tsum_part = pl.pallas_call(
        kernel,
        out_shape=(part_shape, part_shape, part_shape, part_shape),
        grid_spec=pltpu.PrefetchScalarGridSpec(
            num_scalar_prefetch=0,
            grid=(n, num_blocks),
            in_specs=[in_spec, in_spec],
            out_specs=(out_spec, out_spec, out_spec, out_spec),
        ),
        compiler_params=pltpu.CompilerParams(
            dimension_semantics=("parallel", "arbitrary"),
            vmem_limit_bytes=32 * 1024 * 1024),
    )(x3, t3)

    # Tiny epilogue in XLA: final reductions + scalar combine.
    bce_mean = jnp.sum(bce_part) / jnp.float32(n * d)          # true n*d denom
    inter = jnp.sum(inter_part, axis=(1, 2))                   # (n,)
    psum = jnp.sum(psum_part, axis=(1, 2))
    tsum = jnp.sum(tsum_part, axis=(1, 2))
    scores = 2.0 * (inter + 1.0) / (psum + tsum + 1.0)
    dice_score = jnp.clip(jnp.sum(scores) / jnp.float32(n), 0.0, 1.0)
    return bce_mean + (1.0 - dice_score)


def _reference_loss(logits, targets):
    """Pure-JAX reference mirroring the PyTorch forward."""
    n = logits.shape[0]
    x = logits.reshape(n, -1).astype(jnp.float32)
    t = targets.reshape(n, -1).astype(jnp.float32)
    bce = jnp.mean(jnp.maximum(x, 0.0) - x * t + jnp.log1p(jnp.exp(-jnp.abs(x))))
    p = jax.nn.sigmoid(x)
    inter = jnp.sum(p * t, axis=1)
    scores = 2.0 * (inter + 1.0) / (jnp.sum(p, axis=1) + jnp.sum(t, axis=1) + 1.0)
    dice_score = jnp.clip(jnp.sum(scores) / n, 0.0, 1.0)
    return bce + (1.0 - dice_score)


if __name__ == "__main__":
    key = jax.random.PRNGKey(0)
    k_logit, k_tgt = jax.random.split(key)

    # NCHW inputs, as a segmentation head would produce.
    logits = jax.random.normal(k_logit, (2, 4, 16, 16), dtype=jnp.float32)
    targets = (jax.random.uniform(k_tgt, (2, 4, 16, 16)) > 0.5).astype(jnp.float32)

    loss = bce_dice_loss(logits, targets)
    loss = jax.block_until_ready(loss)

    ref = jax.block_until_ready(_reference_loss(logits, targets))
    assert jnp.abs(loss - ref) < 5e-5, (loss, ref)

    print("KERNEL_OK")
</pallas_src>

<mosaic_0001>
module attributes {stable_mosaic.version = 11 : i64} {
  func.func @_bce_dice_partial_kernel(%arg0: i32, %arg1: i32, %arg2: memref<1x8x128xf32, #tpu.memory_space<vmem>>, %arg3: memref<1x8x128xf32, #tpu.memory_space<vmem>>, %arg4: memref<1x8x128xf32, #tpu.memory_space<vmem>>, %arg5: memref<1x8x128xf32, #tpu.memory_space<vmem>>, %arg6: memref<1x8x128xf32, #tpu.memory_space<vmem>>, %arg7: memref<1x8x128xf32, #tpu.memory_space<vmem>>) attributes {dimension_semantics = [#tpu.dimension_semantics<parallel>, #tpu.dimension_semantics<arbitrary>], iteration_bounds = array<i64: 2, 1>, scalar_prefetch = 0 : i64, scratch_operands = 0 : i64, tpu.core_type = #tpu.core_type<tc>, window_params = [{transform_indices = @transform_0, window_bounds = array<i64: 1, 8, 128>}, {transform_indices = @transform_1, window_bounds = array<i64: 1, 8, 128>}, {transform_indices = @transform_2, window_bounds = array<i64: 1, 8, 128>}, {transform_indices = @transform_3, window_bounds = array<i64: 1, 8, 128>}, {transform_indices = @transform_4, window_bounds = array<i64: 1, 8, 128>}, {transform_indices = @transform_5, window_bounds = array<i64: 1, 8, 128>}]} {
    %c0_i32 = arith.constant 0 : i32
    %0 = arith.cmpi eq, %arg1, %c0_i32 : i32
    %1 = arith.extui %0 : i1 to i32
    %c0_i32_0 = arith.constant 0 : i32
    %2 = arith.cmpi ne, %1, %c0_i32_0 : i32
    scf.if %2 {
      %cst_38 = arith.constant 0.000000e+00 : f32
      %49 = vector.broadcast %cst_38 : f32 to vector<1x8x128xf32>
      %c0_39 = arith.constant 0 : index
      %c0_40 = arith.constant 0 : index
      %c0_41 = arith.constant 0 : index
      %50 = vector.load %arg4[%c0_39, %c0_40, %c0_41] : memref<1x8x128xf32, #tpu.memory_space<vmem>>, vector<1x8x128xf32>
      tpu.vector_store %arg4[%c0_39, %c0_40, %c0_41], %49 {strides = array<i32>} : memref<1x8x128xf32, #tpu.memory_space<vmem>>, vector<1x8x128xf32>,
      %cst_42 = arith.constant 0.000000e+00 : f32
      %51 = vector.broadcast %cst_42 : f32 to vector<1x8x128xf32>
      %c0_43 = arith.constant 0 : index
      %c0_44 = arith.constant 0 : index
      %c0_45 = arith.constant 0 : index
      %52 = vector.load %arg5[%c0_43, %c0_44, %c0_45] : memref<1x8x128xf32, #tpu.memory_space<vmem>>, vector<1x8x128xf32>
      tpu.vector_store %arg5[%c0_43, %c0_44, %c0_45], %51 {strides = array<i32>} : memref<1x8x128xf32, #tpu.memory_space<vmem>>, vector<1x8x128xf32>,
      %cst_46 = arith.constant 0.000000e+00 : f32
      %53 = vector.broadcast %cst_46 : f32 to vector<1x8x128xf32>
      %c0_47 = arith.constant 0 : index
      %c0_48 = arith.constant 0 : index
      %c0_49 = arith.constant 0 : index
      %54 = vector.load %arg6[%c0_47, %c0_48, %c0_49] : memref<1x8x128xf32, #tpu.memory_space<vmem>>, vector<1x8x128xf32>
      tpu.vector_store %arg6[%c0_47, %c0_48, %c0_49], %53 {strides = array<i32>} : memref<1x8x128xf32, #tpu.memory_space<vmem>>, vector<1x8x128xf32>,
      %cst_50 = arith.constant 0.000000e+00 : f32
      %55 = vector.broadcast %cst_50 : f32 to vector<1x8x128xf32>
      %c0_51 = arith.constant 0 : index
      %c0_52 = arith.constant 0 : index
      %c0_53 = arith.constant 0 : index
      %56 = vector.load %arg7[%c0_51, %c0_52, %c0_53] : memref<1x8x128xf32, #tpu.memory_space<vmem>>, vector<1x8x128xf32>
      tpu.vector_store %arg7[%c0_51, %c0_52, %c0_53], %55 {strides = array<i32>} : memref<1x8x128xf32, #tpu.memory_space<vmem>>, vector<1x8x128xf32>,
    } else {
    }
    %c0 = arith.constant 0 : index
    %c0_1 = arith.constant 0 : index
    %c0_2 = arith.constant 0 : index
    %3 = vector.load %arg2[%c0, %c0_1, %c0_2] : memref<1x8x128xf32, #tpu.memory_space<vmem>>, vector<1x8x128xf32>
    %4 = vector.shape_cast %3 : vector<1x8x128xf32> to vector<8x128xf32>
    %c0_3 = arith.constant 0 : index
    %c0_4 = arith.constant 0 : index
    %c0_5 = arith.constant 0 : index
    %5 = vector.load %arg3[%c0_3, %c0_4, %c0_5] : memref<1x8x128xf32, #tpu.memory_space<vmem>>, vector<1x8x128xf32>
    %6 = vector.shape_cast %5 : vector<1x8x128xf32> to vector<8x128xf32>
    %7 = math.absf %4 : vector<8x128xf32>
    %cst = arith.constant 0.000000e+00 : f32
    %8 = vector.broadcast %cst : f32 to vector<8x128xf32>
    %9 = arith.subf %8, %7 : vector<8x128xf32>
    %10 = math.exp %9 : vector<8x128xf32>
    %cst_6 = arith.constant 0.000000e+00 : f32
    %11 = vector.broadcast %cst_6 : f32 to vector<8x128xf32>
    %12 = arith.maximumf %4, %11 : vector<8x128xf32>
    %13 = arith.mulf %4, %6 : vector<8x128xf32>
    %14 = arith.subf %12, %13 : vector<8x128xf32>
    %15 = math.log1p %10 : vector<8x128xf32>
    %16 = arith.addf %14, %15 : vector<8x128xf32>
    %cst_7 = arith.constant 0.000000e+00 : f32
    %17 = vector.broadcast %cst_7 : f32 to vector<8x128xf32>
    %18 = arith.cmpf oge, %4, %17 : vector<8x128xf32>
    %cst_8 = arith.constant 1.000000e+00 : f32
    %19 = vector.broadcast %cst_8 : f32 to vector<8x128xf32>
    %20 = arith.select %18, %19, %10 : vector<8x128xi1>, vector<8x128xf32>
    %cst_9 = arith.constant 1.000000e+00 : f32
    %21 = vector.broadcast %cst_9 : f32 to vector<8x128xf32>
    %22 = arith.addf %21, %10 : vector<8x128xf32>
    %23 = arith.divf %20, %22 : vector<8x128xf32>
    %c0_10 = arith.constant 0 : index
    %c0_11 = arith.constant 0 : index
    %c0_12 = arith.constant 0 : index
    %24 = vector.load %arg4[%c0_10, %c0_11, %c0_12] : memref<1x8x128xf32, #tpu.memory_space<vmem>>, vector<1x8x128xf32>
    %25 = vector.shape_cast %16 : vector<8x128xf32> to vector<1x8x128xf32>
    %cst_13 = arith.constant dense<0.000000e+00> : vector<8x128xf32>
    %26 = vector.multi_reduction <add>, %25, %cst_13 [0] : vector<1x8x128xf32> to vector<8x128xf32>
    %27 = vector.shape_cast %26 : vector<8x128xf32> to vector<1x8x128xf32>
    %28 = arith.addf %24, %27 : vector<1x8x128xf32>
    %c0_14 = arith.constant 0 : index
    %c0_15 = arith.constant 0 : index
    %c0_16 = arith.constant 0 : index
    %29 = vector.load %arg4[%c0_14, %c0_15, %c0_16] : memref<1x8x128xf32, #tpu.memory_space<vmem>>, vector<1x8x128xf32>
    tpu.vector_store %arg4[%c0_14, %c0_15, %c0_16], %28 {strides = array<i32>} : memref<1x8x128xf32, #tpu.memory_space<vmem>>, vector<1x8x128xf32>,
    %c0_17 = arith.constant 0 : index
    %c0_18 = arith.constant 0 : index
    %c0_19 = arith.constant 0 : index
    %30 = vector.load %arg5[%c0_17, %c0_18, %c0_19] : memref<1x8x128xf32, #tpu.memory_space<vmem>>, vector<1x8x128xf32>
    %31 = arith.mulf %23, %6 : vector<8x128xf32>
    %32 = vector.shape_cast %31 : vector<8x128xf32> to vector<1x8x128xf32>
    %cst_20 = arith.constant dense<0.000000e+00> : vector<8x128xf32>
    %33 = vector.multi_reduction <add>, %32, %cst_20 [0] : vector<1x8x128xf32> to vector<8x128xf32>
    %34 = vector.shape_cast %33 : vector<8x128xf32> to vector<1x8x128xf32>
    %35 = arith.addf %30, %34 : vector<1x8x128xf32>
    %c0_21 = arith.constant 0 : index
    %c0_22 = arith.constant 0 : index
    %c0_23 = arith.constant 0 : index
    %36 = vector.load %arg5[%c0_21, %c0_22, %c0_23] : memref<1x8x128xf32, #tpu.memory_space<vmem>>, vector<1x8x128xf32>
    tpu.vector_store %arg5[%c0_21, %c0_22, %c0_23], %35 {strides = array<i32>} : memref<1x8x128xf32, #tpu.memory_space<vmem>>, vector<1x8x128xf32>,
    %c0_24 = arith.constant 0 : index
    %c0_25 = arith.constant 0 : index
    %c0_26 = arith.constant 0 : index
    %37 = vector.load %arg6[%c0_24, %c0_25, %c0_26] : memref<1x8x128xf32, #tpu.memory_space<vmem>>, vector<1x8x128xf32>
    %38 = vector.shape_cast %23 : vector<8x128xf32> to vector<1x8x128xf32>
    %cst_27 = arith.constant dense<0.000000e+00> : vector<8x128xf32>
    %39 = vector.multi_reduction <add>, %38, %cst_27 [0] : vector<1x8x128xf32> to vector<8x128xf32>
    %40 = vector.shape_cast %39 : vector<8x128xf32> to vector<1x8x128xf32>
    %41 = arith.addf %37, %40 : vector<1x8x128xf32>
    %c0_28 = arith.constant 0 : index
    %c0_29 = arith.constant 0 : index
    %c0_30 = arith.constant 0 : index
    %42 = vector.load %arg6[%c0_28, %c0_29, %c0_30] : memref<1x8x128xf32, #tpu.memory_space<vmem>>, vector<1x8x128xf32>
    tpu.vector_store %arg6[%c0_28, %c0_29, %c0_30], %41 {strides = array<i32>} : memref<1x8x128xf32, #tpu.memory_space<vmem>>, vector<1x8x128xf32>,
    %c0_31 = arith.constant 0 : index
    %c0_32 = arith.constant 0 : index
    %c0_33 = arith.constant 0 : index
    %43 = vector.load %arg7[%c0_31, %c0_32, %c0_33] : memref<1x8x128xf32, #tpu.memory_space<vmem>>, vector<1x8x128xf32>
    %44 = vector.shape_cast %6 : vector<8x128xf32> to vector<1x8x128xf32>
    %cst_34 = arith.constant dense<0.000000e+00> : vector<8x128xf32>
    %45 = vector.multi_reduction <add>, %44, %cst_34 [0] : vector<1x8x128xf32> to vector<8x128xf32>
    %46 = vector.shape_cast %45 : vector<8x128xf32> to vector<1x8x128xf32>
    %47 = arith.addf %43, %46 : vector<1x8x128xf32>
    %c0_35 = arith.constant 0 : index
    %c0_36 = arith.constant 0 : index
    %c0_37 = arith.constant 0 : index
    %48 = vector.load %arg7[%c0_35, %c0_36, %c0_37] : memref<1x8x128xf32, #tpu.memory_space<vmem>>, vector<1x8x128xf32>
    tpu.vector_store %arg7[%c0_35, %c0_36, %c0_37], %47 {strides = array<i32>} : memref<1x8x128xf32, #tpu.memory_space<vmem>>, vector<1x8x128xf32>,
    return
  }
  func.func @transform_0(%arg0: i32, %arg1: i32) -> (i32, i32, i32) {
    %c0_i32 = arith.constant 0 : i32
    %c0_i32_0 = arith.constant 0 : i32
    return %arg0, %arg1, %c0_i32 : i32, i32, i32
  }
  func.func @transform_1(%arg0: i32, %arg1: i32) -> (i32, i32, i32) {
    %c0_i32 = arith.constant 0 : i32
    %c0_i32_0 = arith.constant 0 : i32
    return %arg0, %arg1, %c0_i32 : i32, i32, i32
  }
  func.func @transform_2(%arg0: i32, %arg1: i32) -> (i32, i32, i32) {
    %c0_i32 = arith.constant 0 : i32
    %c0_i32_0 = arith.constant 0 : i32
    %c0_i32_1 = arith.constant 0 : i32
    return %arg0, %c0_i32, %c0_i32_0 : i32, i32, i32
  }
  func.func @transform_3(%arg0: i32, %arg1: i32) -> (i32, i32, i32) {
    %c0_i32 = arith.constant 0 : i32
    %c0_i32_0 = arith.constant 0 : i32
    %c0_i32_1 = arith.constant 0 : i32
    return %arg0, %c0_i32, %c0_i32_0 : i32, i32, i32
  }
  func.func @transform_4(%arg0: i32, %arg1: i32) -> (i32, i32, i32) {
    %c0_i32 = arith.constant 0 : i32
    %c0_i32_0 = arith.constant 0 : i32
    %c0_i32_1 = arith.constant 0 : i32
    return %arg0, %c0_i32, %c0_i32_0 : i32, i32, i32
  }
  func.func @transform_5(%arg0: i32, %arg1: i32) -> (i32, i32, i32) {
    %c0_i32 = arith.constant 0 : i32
    %c0_i32_0 = arith.constant 0 : i32
    %c0_i32_1 = arith.constant 0 : i32
    return %arg0, %c0_i32, %c0_i32_0 : i32, i32, i32
  }
}

</mosaic_0001>

<llo_original>
// kernel: tpu_custom_call.1
$region0: #{tpu_custom_call.1}
  #allocation0 [shape = 'u32[]', space=smem, size = 0x4, offset = 0x4, fixed_abs, tag = 'smem constant byte address 0x4 - core index']
  #allocation1 [shape = 'u32[144,128]{1,0:T(1,128)}', space=vmem, size = 0x12000, scoped, tag = 'internal scratch']
  %s0 = inlined_call_operand.hbm [shape: f32[2,8,128], index: 0, kind: input, shape index: {}]
  %s1 = inlined_call_operand.hbm [shape: f32[2,8,128], index: 1, kind: input, shape index: {}]
  %s2 = inlined_call_operand.hbm [shape: f32[2,8,128], index: 2, kind: output, shape index: {0}]
  %s3 = inlined_call_operand.hbm [shape: f32[2,8,128], index: 3, kind: output, shape index: {1}]
  %s4 = inlined_call_operand.hbm [shape: f32[2,8,128], index: 4, kind: output, shape index: {2}]
  %s5 = inlined_call_operand.hbm [shape: f32[2,8,128], index: 5, kind: output, shape index: {3}]
  %6 = xla_tuple %s2, %s3, %s4, %s5
  %s7 = sld [smem:[#allocation0]]
  $region77: #{tpu_custom_call.1} parent=0
    _
  %s9 = ssub.s32 1, %s7
  %s10 = scalar_select 0, %s9, %s7
  $region1: #{tpu_custom_call.1} parent=0
    #allocation2 [shape = 'u8[8192]{0}', space=vmem, size = 0x2000, scoped, tag = 'input window, operand 0']
    #allocation3 [shape = 's32[2]{0}', space=sflag, size = 0x8, scoped, tag = 'scoped memory for tpu_custom_call.1']
    #allocation4 [shape = 's32[2]{0}', space=sflag, size = 0x8, scoped, tag = 'scoped memory for tpu_custom_call.1']
    #allocation5 [shape = 'u8[8192]{0}', space=vmem, size = 0x2000, scoped, tag = 'input window, operand 1']
    #allocation6 [shape = 's32[2]{0}', space=sflag, size = 0x8, scoped, tag = 'scoped memory for tpu_custom_call.1']
    #allocation7 [shape = 'u8[8192]{0}', space=vmem, size = 0x2000, scoped, tag = 'output window, operand 0']
    #allocation8 [shape = 'u8[8192]{0}', space=vmem, size = 0x2000, scoped, tag = 'output window, operand 1']
    #allocation9 [shape = 's32[2]{0}', space=sflag, size = 0x8, scoped, tag = 'scoped memory for tpu_custom_call.1']
    #allocation10 [shape = 'u8[8192]{0}', space=vmem, size = 0x2000, scoped, tag = 'output window, operand 2']
    #allocation11 [shape = 'u8[8192]{0}', space=vmem, size = 0x2000, scoped, tag = 'output window, operand 3']
    #allocation12 [shape = 's32[2]{0}', space=sflag, size = 0x8, scoped, tag = 'scoped memory for tpu_custom_call.1']
    %11 = vsyncpa [#allocation3], 0
    %s12 = scalar_lea.sflag [#allocation3], 1
    %13 = vsyncpa %s12, 0
    %14 = vsyncpa [#allocation6], 0
    %s15 = scalar_lea.sflag [#allocation6], 1
    %16 = vsyncpa %s15, 0
    %17 = vsyncpa [#allocation4], 0
    %s18 = scalar_lea.sflag [#allocation4], 1
    %19 = vsyncpa %s18, 0
    %20 = vsyncpa [#allocation9], 0
    %s21 = scalar_lea.sflag [#allocation9], 1
    %22 = vsyncpa %s21, 0
    %23 = vsyncpa [#allocation12], 0
    %s24 = scalar_lea.sflag [#allocation12], 1
    %25 = vsyncpa %s24, 0
    loop: start=0, step=1, limit=4
    $region2: #{tpu_custom_call.1} parent=1 // loop_pre_header
      _
    $region3: #{tpu_custom_call.1} parent=1 // loop_header
      %s27 = sphi 0, %s31
      %p28 = scmp.ge.s32.totalorder %s27, 4
      %s34 = sphi 0, %s46
      %s35 = sphi 0, %s42
      %s36 = sphi 0, %s34
      %s37 = sphi 0, %s35
      %s38 = sphi 0, %s36
      %s39 = sphi 0, %s37
      %s51 = sphi 0, %s53
      %s54 = sphi 0, %s51
      %s55 = sphi 0, %s54
      %s71 = sphi 0, %s55
      %s79 = sphi 0, %s81
      %s82 = sphi 0, %s79
      %s83 = sphi 0, %s82
      %s99 = sphi 0, %s83
      %s105 = sphi 0, %s107
      %s108 = sphi 0, %s105
      %s109 = sphi 0, %s108
      %s125 = sphi 0, %s109
      %s131 = sphi 0, %s133
      %s134 = sphi 0, %s131
      %s135 = sphi 0, %s134
      %s151 = sphi 0, %s135
      %s157 = sphi 0, %s159
      %s160 = sphi 0, %s157
      %s161 = sphi 0, %s160
      %s177 = sphi 0, %s161
      %s183 = sphi 0, %s185
      %s186 = sphi 0, %s183
      %s187 = sphi 0, %s186
      %s203 = sphi 0, %s187
    $region4: #{tpu_custom_call.1} parent=1 // loop_header_branch
      %30 = sbr.rel (%p28) target = $region8
    $region5: #{tpu_custom_call.1} parent=1 // loop_body
      %s32 = ssub.s32 %s27, 1
      %s33 = ssub.s32 %s27, 2
      %s40 = sadd.s32 1, %s35
      %p41 = scmp.ge.s32.totalorder %s40, 1
      %s42 = scalar_select %p41, 0, %s40
      %s43 = sadd.s32 1, %s34
      %s44 = scalar_select %p41, %s43, %s34
      %p45 = scmp.ge.s32.totalorder %s44, 2
      %s46 = scalar_select %p45, 0, %s44
      %s47 = ssub.s32 %s34, %s46
      %s48 = ssub.s32 %s35, %s42
      %s49 = sor.u32 %s47, %s48
      %p50 = scmp.eq.s32.totalorder %s49, 0
      %s52 = sadd.s32 %s51, 1
      %s53 = scalar_select %p50, %s51, %s52
      %p56 = pneg %p50
      %p57 = scmp.eq.s32.totalorder %s27, 1
      %p58 = por %p56, %p57
      %p59 = scmp.ne.s32.totalorder %s51, %s54
      %p60 = scmp.eq.s32.totalorder %s27, 0
      %p61 = por %p59, %p60
      %p62 = scmp.ne.s32.totalorder %s51, %s54
      %p63 = scmp.eq.s32.totalorder %s32, 1
      %p64 = por %p62, %p63
      %p65 = scmp.ne.s32.totalorder %s54, %s55
      %p66 = scmp.eq.s32.totalorder %s32, 0
      %p67 = por %p65, %p66
      %p68 = scmp.ne.s32.totalorder %s54, %s55
      %p69 = scmp.eq.s32.totalorder %s33, 1
      %p70 = por %p68, %p69
      %p72 = scmp.ne.s32.totalorder %s55, %s71
      %p73 = scmp.eq.s32.totalorder %s33, 0
      %p74 = por %p72, %p73
      %s75 = ssub.s32 %s34, %s46
      %s76 = ssub.s32 %s35, %s42
      %s77 = sor.u32 %s75, %s76
      %p78 = scmp.eq.s32.totalorder %s77, 0
      %s80 = sadd.s32 %s79, 1
      %s81 = scalar_select %p78, %s79, %s80
      %p84 = pneg %p78
      %p85 = scmp.eq.s32.totalorder %s27, 1
      %p86 = por %p84, %p85
      %p87 = scmp.ne.s32.totalorder %s79, %s82
      %p88 = scmp.eq.s32.totalorder %s27, 0
      %p89 = por %p87, %p88
      %p90 = scmp.ne.s32.totalorder %s79, %s82
      %p91 = scmp.eq.s32.totalorder %s32, 1
      %p92 = por %p90, %p91
      %p93 = scmp.ne.s32.totalorder %s82, %s83
      %p94 = scmp.eq.s32.totalorder %s32, 0
      %p95 = por %p93, %p94
      %p96 = scmp.ne.s32.totalorder %s82, %s83
      %p97 = scmp.eq.s32.totalorder %s33, 1
      %p98 = por %p96, %p97
      %p100 = scmp.ne.s32.totalorder %s83, %s99
      %p101 = scmp.eq.s32.totalorder %s33, 0
      %p102 = por %p100, %p101
      %s103 = ssub.s32 %s34, %s46
      %p104 = scmp.eq.s32.totalorder %s103, 0
      %s106 = sadd.s32 %s105, 1
      %s107 = scalar_select %p104, %s105, %s106
      %p110 = pneg %p104
      %p111 = scmp.eq.s32.totalorder %s27, 1
      %p112 = por %p110, %p111
      %p113 = scmp.ne.s32.totalorder %s105, %s108
      %p114 = scmp.eq.s32.totalorder %s27, 0
      %p115 = por %p113, %p114
      %p116 = scmp.ne.s32.totalorder %s105, %s108
      %p117 = scmp.eq.s32.totalorder %s32, 1
      %p118 = por %p116, %p117
      %p119 = scmp.ne.s32.totalorder %s108, %s109
      %p120 = scmp.eq.s32.totalorder %s32, 0
      %p121 = por %p119, %p120
      %p122 = scmp.ne.s32.totalorder %s108, %s109
      %p123 = scmp.eq.s32.totalorder %s33, 1
      %p124 = por %p122, %p123
      %p126 = scmp.ne.s32.totalorder %s109, %s125
      %p127 = scmp.eq.s32.totalorder %s33, 0
      %p128 = por %p126, %p127
      %s129 = ssub.s32 %s34, %s46
      %p130 = scmp.eq.s32.totalorder %s129, 0
      %s132 = sadd.s32 %s131, 1
      %s133 = scalar_select %p130, %s131, %s132
      %p136 = pneg %p130
      %p137 = scmp.eq.s32.totalorder %s27, 1
      %p138 = por %p136, %p137
      %p139 = scmp.ne.s32.totalorder %s131, %s134
      %p140 = scmp.eq.s32.totalorder %s27, 0
      %p141 = por %p139, %p140
      %p142 = scmp.ne.s32.totalorder %s131, %s134
      %p143 = scmp.eq.s32.totalorder %s32, 1
      %p144 = por %p142, %p143
      %p145 = scmp.ne.s32.totalorder %s134, %s135
      %p146 = scmp.eq.s32.totalorder %s32, 0
      %p147 = por %p145, %p146
      %p148 = scmp.ne.s32.totalorder %s134, %s135
      %p149 = scmp.eq.s32.totalorder %s33, 1
      %p150 = por %p148, %p149
      %p152 = scmp.ne.s32.totalorder %s135, %s151
      %p153 = scmp.eq.s32.totalorder %s33, 0
      %p154 = por %p152, %p153
      %s155 = ssub.s32 %s34, %s46
      %p156 = scmp.eq.s32.totalorder %s155, 0
      %s158 = sadd.s32 %s157, 1
      %s159 = scalar_select %p156, %s157, %s158
      %p162 = pneg %p156
      %p163 = scmp.eq.s32.totalorder %s27, 1
      %p164 = por %p162, %p163
      %p165 = scmp.ne.s32.totalorder %s157, %s160
      %p166 = scmp.eq.s32.totalorder %s27, 0
      %p167 = por %p165, %p166
      %p168 = scmp.ne.s32.totalorder %s157, %s160
      %p169 = scmp.eq.s32.totalorder %s32, 1
      %p170 = por %p168, %p169
      %p171 = scmp.ne.s32.totalorder %s160, %s161
      %p172 = scmp.eq.s32.totalorder %s32, 0
      %p173 = por %p171, %p172
      %p174 = scmp.ne.s32.totalorder %s160, %s161
      %p175 = scmp.eq.s32.totalorder %s33, 1
      %p176 = por %p174, %p175
      %p178 = scmp.ne.s32.totalorder %s161, %s177
      %p179 = scmp.eq.s32.totalorder %s33, 0
      %p180 = por %p178, %p179
      %s181 = ssub.s32 %s34, %s46
      %p182 = scmp.eq.s32.totalorder %s181, 0
      %s184 = sadd.s32 %s183, 1
      %s185 = scalar_select %p182, %s183, %s184
      %p188 = pneg %p182
      %p189 = scmp.eq.s32.totalorder %s27, 1
      %p190 = por %p188, %p189
      %p191 = scmp.ne.s32.totalorder %s183, %s186
      %p192 = scmp.eq.s32.totalorder %s27, 0
      %p193 = por %p191, %p192
      %p194 = scmp.ne.s32.totalorder %s183, %s186
      %p195 = scmp.eq.s32.totalorder %s32, 1
      %p196 = por %p194, %p195
      %p197 = scmp.ne.s32.totalorder %s186, %s187
      %p198 = scmp.eq.s32.totalorder %s32, 0
      %p199 = por %p197, %p198
      %p200 = scmp.ne.s32.totalorder %s186, %s187
      %p201 = scmp.eq.s32.totalorder %s33, 1
      %p202 = por %p200, %p201
      %p204 = scmp.ne.s32.totalorder %s187, %s203
      %p205 = scmp.eq.s32.totalorder %s33, 0
      %p206 = por %p204, %p205
      %p207 = scmp.le.s32.totalorder 1, %s27
      %p208 = scmp.lt.s32.totalorder %s27, 3
      %p209 = pnand %p207, %p208
      %p210 = pneg %p209
      // Predicated region
      $region9: #{tpu_custom_call.1} parent=5 // pred_check
        _
      $region10: #{tpu_custom_call.1} parent=5 // pred_check_branch
        %212 = sbr.rel (%p209) target = $region12
      $region11: #{tpu_custom_call.1} parent=5 // pred_region
        %s213 = ssub.s32 %s27, 1
      $region12: #{tpu_custom_call.1} parent=5 // pred_fallthru
        _
      %p214 = scmp.lt.s32.totalorder %s27, 2
      // Predicated region
      $region13: #{tpu_custom_call.1} parent=5 // pred_check
        %p215 = pneg %p214
      $region14: #{tpu_custom_call.1} parent=5 // pred_check_branch
        %217 = sbr.rel (%p215) target = $region16
      $region15: #{tpu_custom_call.1} parent=5 // pred_region
        // Predicated region
        $region17: #{tpu_custom_call.1} parent=15 // pred_check
          %p218 = pneg %p61
        $region18: #{tpu_custom_call.1} parent=15 // pred_check_branch
          %220 = sbr.rel (%p218) target = $region20
        $region19: #{tpu_custom_call.1} parent=15 // pred_region
          %s221 = sand.u32 %s51, 1
          %s222 = scalar_lea.sflag [#allocation3], %s221
          %s223 = sand.u32 %s51, 1
          %s224 = smul.addr %s223, 8
          %s225 = scalar_lea.vmem [#allocation2], %s224
          %s227 = ssub.s32 128, 128
          %228 = vsyncadd %s222, %s227
          %s229 = sadd.s32 %s35, %s34
          %s230 = smul.addr %s229, 128
          %s231 = scalar_lea.hbm %s0, %s230
          %s233 = sshll.u32 %s225, 4
          %s234 = int_to_ptr.vmem [resolvable:$true] %s233
          %236 = dma.hbm_to_vmem [thread:$0]  %s231, 128, %s234, %s222
        $region20: #{tpu_custom_call.1} parent=15 // pred_fallthru
          _
        // Predicated region
        $region21: #{tpu_custom_call.1} parent=15 // pred_check
          %p237 = pneg %p89
        $region22: #{tpu_custom_call.1} parent=15 // pred_check_branch
          %239 = sbr.rel (%p237) target = $region24
        $region23: #{tpu_custom_call.1} parent=15 // pred_region
          %s240 = sand.u32 %s79, 1
          %s241 = scalar_lea.sflag [#allocation6], %s240
          %s242 = sand.u32 %s79, 1
          %s243 = smul.addr %s242, 8
          %s244 = scalar_lea.vmem [#allocation5], %s243
          %s246 = ssub.s32 128, 128
          %247 = vsyncadd %s241, %s246
          %s248 = sadd.s32 %s35, %s34
          %s249 = smul.addr %s248, 128
          %s250 = scalar_lea.hbm %s1, %s249
          %s252 = sshll.u32 %s244, 4
          %s253 = int_to_ptr.vmem [resolvable:$true] %s252
          %255 = dma.hbm_to_vmem [thread:$0]  %s250, 128, %s253, %s241
        $region24: #{tpu_custom_call.1} parent=15 // pred_fallthru
          _
      $region16: #{tpu_custom_call.1} parent=5 // pred_fallthru
        _
      %p256 = scmp.le.s32.totalorder 1, %s27
      %p257 = scmp.lt.s32.totalorder %s27, 3
      %p258 = pnand %p256, %p257
      %p259 = pneg %p258
      // Predicated region
      $region25: #{tpu_custom_call.1} parent=5 // pred_check
        _
      $region26: #{tpu_custom_call.1} parent=5 // pred_check_branch
        %261 = sbr.rel (%p258) target = $region28
      $region27: #{tpu_custom_call.1} parent=5 // pred_region
        %s262 = ssub.s32 %s27, 1
        %s263 = sand.u32 %s54, 1
        %s264 = scalar_lea.sflag [#allocation3], %s263
        %s265 = sand.u32 %s54, 1
        %s266 = smul.addr %s265, 8
        %s267 = scalar_lea.vmem [#allocation2], %s266
        // Predicated region
        $region29: #{tpu_custom_call.1} parent=27 // pred_check
          %p268 = pneg %p67
        $region30: #{tpu_custom_call.1} parent=27 // pred_check_branch
          %270 = sbr.rel (%p268) target = $region32
        $region31: #{tpu_custom_call.1} parent=27 // pred_region
          %271 = dma.done %s264, 128
        $region32: #{tpu_custom_call.1} parent=27 // pred_fallthru
          _
        %s272 = sand.u32 %s82, 1
        %s273 = scalar_lea.sflag [#allocation6], %s272
        %s274 = sand.u32 %s82, 1
        %s275 = smul.addr %s274, 8
        %s276 = scalar_lea.vmem [#allocation5], %s275
        // Predicated region
        $region33: #{tpu_custom_call.1} parent=27 // pred_check
          %p277 = pneg %p95
        $region34: #{tpu_custom_call.1} parent=27 // pred_check_branch
          %279 = sbr.rel (%p277) target = $region36
        $region35: #{tpu_custom_call.1} parent=27 // pred_region
          %280 = dma.done %s273, 128
        $region36: #{tpu_custom_call.1} parent=27 // pred_fallthru
          _
        %s281 = sand.u32 %s54, 1
        %s282 = scalar_lea.sflag [#allocation3], %s281
        %s283 = sand.u32 %s54, 1
        %s284 = smul.addr %s283, 8
        %s285 = scalar_lea.vmem [#allocation2], %s284
        %p286 = pneg %p67
        %p287 = pneg %p64
        %s288 = sand.u32 %s82, 1
        %s289 = scalar_lea.sflag [#allocation6], %s288
        %s290 = sand.u32 %s82, 1
        %s291 = smul.addr %s290, 8
        %s292 = scalar_lea.vmem [#allocation5], %s291
        %p293 = pneg %p95
        %p294 = pneg %p92
        %p295 = pneg %p121
        %p296 = pneg %p118
        %s297 = sand.u32 %s108, 1
        %s298 = scalar_lea.sflag [#allocation4], %s297
        %s299 = sand.u32 %s108, 1
        %s300 = smul.addr %s299, 8
        %s301 = scalar_lea.vmem [#allocation7], %s300
        %p302 = pneg %p147
        %p303 = pneg %p144
        %s304 = sand.u32 %s32, 1
        %s305 = scalar_lea.sflag [#allocation9], %s304
        %s306 = sand.u32 %s134, 1
        %s307 = smul.addr %s306, 8
        %s308 = scalar_lea.vmem [#allocation8], %s307
        %p309 = pneg %p173
        %p310 = pneg %p170
        %s311 = sand.u32 %s32, 1
        %s312 = scalar_lea.sflag [#allocation9], %s311
        %s313 = sand.u32 %s160, 1
        %s314 = smul.addr %s313, 8
        %s315 = scalar_lea.vmem [#allocation10], %s314
        %p316 = pneg %p199
        %p317 = pneg %p196
        %s318 = sand.u32 %s186, 1
        %s319 = scalar_lea.sflag [#allocation12], %s318
        %s320 = sand.u32 %s186, 1
        %s321 = smul.addr %s320, 8
        %s322 = scalar_lea.vmem [#allocation11], %s321
        %p323 = scmp.eq.s32.totalorder %s37, 0
        // Predicated region
        $region37: #{tpu_custom_call.1} parent=27 // pred_check
          %p324 = pneg %p323
        $region38: #{tpu_custom_call.1} parent=27 // pred_check_branch
          %326 = sbr.rel (%p324) target = $region40
        $region39: #{tpu_custom_call.1} parent=27 // pred_region
          %327 = vst [vmem:[%s301] sm:$0xff] 0.0
          %328 = vst [vmem:[%s308] sm:$0xff] 0.0
          %329 = vst [vmem:[%s315] sm:$0xff] 0.0
          %330 = vst [vmem:[%s322] sm:$0xff] 0.0
        $region40: #{tpu_custom_call.1} parent=27 // pred_fallthru
          _
        %v331 = vld [vmem:[%s267] sm:$0xff]
        %v332 = vld [vmem:[%s276] sm:$0xff]
        %v333 = vand.u32 2147483647, %v331
        %v334 = vsub.f32 0.0, %v333
        %v335 = vmul.f32 %v334, 1.442695
        %v336 = vpow.pop %v335
        %v337 = vmax.f32 %v331, 0.0
        %v338 = vmul.f32 %v331, %v332
        %v339 = vsub.f32 %v337, %v338
        %v340 = vadd.f32 %v336, 1.0
        %v341 = vlog2.pop %v340
        %v342 = vmul.f32 %v341, 0.6931472
        %v343 = vmul.f32 -0.5, %v336
        %v344 = vadd.f32 %v343, 1.0
        %v345 = vmul.f32 %v344, %v336
        %v346 = vand.u32 2147483647, %v336
        %vm347 = vcmp.lt.f32.partialorder %v346, 0.0004427343
        %v348 = vsel %vm347, %v345, %v342
        %v349 = vadd.f32 %v339, %v348
        %vm350 = vcmp.ge.f32.partialorder %v331, 0.0
        %v351 = vsel %vm350, 1.0, %v336
        %v352 = vadd.f32 %v336, 1.0
        %v353 = vrcp.pop %v352
        %v354 = vmul.f32 %v351, %v353
        %v355 = vld [vmem:[%s301] sm:$0xff]
        %v356 = vadd.f32 %v349, 0.0
        %v357 = vadd.f32 %v355, %v356
        %358 = vst [vmem:[%s301] sm:$0xff] %v357
        %v359 = vld [vmem:[%s308] sm:$0xff]
        %v360 = vmul.f32 %v354, %v332
        %v361 = vadd.f32 %v360, 0.0
        %v362 = vadd.f32 %v359, %v361
        %363 = vst [vmem:[%s308] sm:$0xff] %v362
        %v364 = vld [vmem:[%s315] sm:$0xff]
        %v365 = vadd.f32 %v354, 0.0
        %v366 = vadd.f32 %v364, %v365
        %367 = vst [vmem:[%s315] sm:$0xff] %v366
        %v368 = vld [vmem:[%s322] sm:$0xff]
        %v369 = vadd.f32 %v332, 0.0
        %v370 = vadd.f32 %v368, %v369
        %371 = vst [vmem:[%s322] sm:$0xff] %v370
        %s372 = sand.u32 %s108, 1
        %s373 = scalar_lea.sflag [#allocation4], %s372
        %s374 = sand.u32 %s108, 1
        %s375 = smul.addr %s374, 8
        %s376 = scalar_lea.vmem [#allocation7], %s375
        %s377 = sand.u32 %s32, 1
        %s378 = scalar_lea.sflag [#allocation9], %s377
        %s379 = sand.u32 %s134, 1
        %s380 = smul.addr %s379, 8
        %s381 = scalar_lea.vmem [#allocation8], %s380
        %s382 = sand.u32 %s32, 1
        %s383 = scalar_lea.sflag [#allocation9], %s382
        %s384 = sand.u32 %s160, 1
        %s385 = smul.addr %s384, 8
        %s386 = scalar_lea.vmem [#allocation10], %s385
        %s387 = sand.u32 %s186, 1
        %s388 = scalar_lea.sflag [#allocation12], %s387
        %s389 = sand.u32 %s186, 1
        %s390 = smul.addr %s389, 8
        %s391 = scalar_lea.vmem [#allocation11], %s390
        // Predicated region
        $region41: #{tpu_custom_call.1} parent=27 // pred_check
          %p392 = pneg %p118
        $region42: #{tpu_custom_call.1} parent=27 // pred_check_branch
          %394 = sbr.rel (%p392) target = $region44
        $region43: #{tpu_custom_call.1} parent=27 // pred_region
          %s396 = ssub.s32 128, 128
          %397 = vsyncadd %s373, %s396
          %s398 = smul.addr %s36, 128
          %s399 = scalar_lea.hbm %s2, %s398
          %s401 = sshll.u32 %s376, 4
          %s402 = int_to_ptr.vmem [resolvable:$true] %s401
          %404 = dma.vmem_to_hbm [thread:$0]  %s402, 128, %s399, %s373
        $region44: #{tpu_custom_call.1} parent=27 // pred_fallthru
          _
        // Predicated region
        $region45: #{tpu_custom_call.1} parent=27 // pred_check
          %p405 = pneg %p144
        $region46: #{tpu_custom_call.1} parent=27 // pred_check_branch
          %407 = sbr.rel (%p405) target = $region48
        $region47: #{tpu_custom_call.1} parent=27 // pred_region
          %s409 = ssub.s32 128, 128
          %410 = vsyncadd %s378, %s409
          %s411 = smul.addr %s36, 128
          %s412 = scalar_lea.hbm %s3, %s411
          %s414 = sshll.u32 %s381, 4
          %s415 = int_to_ptr.vmem [resolvable:$true] %s414
          %417 = dma.vmem_to_hbm [thread:$0]  %s415, 128, %s412, %s378
        $region48: #{tpu_custom_call.1} parent=27 // pred_fallthru
          _
        // Predicated region
        $region49: #{tpu_custom_call.1} parent=27 // pred_check
          %p418 = pneg %p170
        $region50: #{tpu_custom_call.1} parent=27 // pred_check_branch
          %420 = sbr.rel (%p418) target = $region52
        $region51: #{tpu_custom_call.1} parent=27 // pred_region
          %s422 = ssub.s32 128, 128
          %423 = vsyncadd %s383, %s422
          %s424 = smul.addr %s36, 128
          %s425 = scalar_lea.hbm %s4, %s424
          %s427 = sshll.u32 %s386, 4
          %s428 = int_to_ptr.vmem [resolvable:$true] %s427
          %430 = dma.vmem_to_hbm [thread:$0]  %s428, 128, %s425, %s383
        $region52: #{tpu_custom_call.1} parent=27 // pred_fallthru
          _
        // Predicated region
        $region53: #{tpu_custom_call.1} parent=27 // pred_check
          %p431 = pneg %p196
        $region54: #{tpu_custom_call.1} parent=27 // pred_check_branch
          %433 = sbr.rel (%p431) target = $region56
        $region55: #{tpu_custom_call.1} parent=27 // pred_region
          %s435 = ssub.s32 128, 128
          %436 = vsyncadd %s388, %s435
          %s437 = smul.addr %s36, 128
          %s438 = scalar_lea.hbm %s5, %s437
          %s440 = sshll.u32 %s391, 4
          %s441 = int_to_ptr.vmem [resolvable:$true] %s440
          %443 = dma.vmem_to_hbm [thread:$0]  %s441, 128, %s438, %s388
        $region56: #{tpu_custom_call.1} parent=27 // pred_fallthru
          _
      $region28: #{tpu_custom_call.1} parent=5 // pred_fallthru
        _
      %p444 = scmp.le.s32.totalorder 2, %s27
      // Predicated region
      $region57: #{tpu_custom_call.1} parent=5 // pred_check
        %p445 = pneg %p444
      $region58: #{tpu_custom_call.1} parent=5 // pred_check_branch
        %447 = sbr.rel (%p445) target = $region60
      $region59: #{tpu_custom_call.1} parent=5 // pred_region
        %s448 = ssub.s32 %s27, 2
        // Predicated region
        $region61: #{tpu_custom_call.1} parent=59 // pred_check
          %p449 = pneg %p124
        $region62: #{tpu_custom_call.1} parent=59 // pred_check_branch
          %451 = sbr.rel (%p449) target = $region64
        $region63: #{tpu_custom_call.1} parent=59 // pred_region
          %s452 = sand.u32 %s109, 1
          %s453 = scalar_lea.sflag [#allocation4], %s452
          %s454 = sand.u32 %s109, 1
          %s455 = smul.addr %s454, 8
          %s456 = scalar_lea.vmem [#allocation7], %s455
          %457 = dma.done %s453, 128
        $region64: #{tpu_custom_call.1} parent=59 // pred_fallthru
          _
        // Predicated region
        $region65: #{tpu_custom_call.1} parent=59 // pred_check
          %p458 = pneg %p150
        $region66: #{tpu_custom_call.1} parent=59 // pred_check_branch
          %460 = sbr.rel (%p458) target = $region68
        $region67: #{tpu_custom_call.1} parent=59 // pred_region
          %s461 = sand.u32 %s33, 1
          %s462 = scalar_lea.sflag [#allocation9], %s461
          %s463 = sand.u32 %s135, 1
          %s464 = smul.addr %s463, 8
          %s465 = scalar_lea.vmem [#allocation8], %s464
          %466 = dma.done %s462, 128
        $region68: #{tpu_custom_call.1} parent=59 // pred_fallthru
          _
        // Predicated region
        $region69: #{tpu_custom_call.1} parent=59 // pred_check
          %p467 = pneg %p176
        $region70: #{tpu_custom_call.1} parent=59 // pred_check_branch
          %469 = sbr.rel (%p467) target = $region72
        $region71: #{tpu_custom_call.1} parent=59 // pred_region
          %s470 = sand.u32 %s33, 1
          %s471 = scalar_lea.sflag [#allocation9], %s470
          %s472 = sand.u32 %s161, 1
          %s473 = smul.addr %s472, 8
          %s474 = scalar_lea.vmem [#allocation10], %s473
          %475 = dma.done %s471, 128
        $region72: #{tpu_custom_call.1} parent=59 // pred_fallthru
          _
        // Predicated region
        $region73: #{tpu_custom_call.1} parent=59 // pred_check
          %p476 = pneg %p202
        $region74: #{tpu_custom_call.1} parent=59 // pred_check_branch
          %478 = sbr.rel (%p476) target = $region76
        $region75: #{tpu_custom_call.1} parent=59 // pred_region
          %s479 = sand.u32 %s187, 1
          %s480 = scalar_lea.sflag [#allocation12], %s479
          %s481 = sand.u32 %s187, 1
          %s482 = smul.addr %s481, 8
          %s483 = scalar_lea.vmem [#allocation11], %s482
          %484 = dma.done %s480, 128
        $region76: #{tpu_custom_call.1} parent=59 // pred_fallthru
          _
      $region60: #{tpu_custom_call.1} parent=5 // pred_fallthru
        _
    $region6: #{tpu_custom_call.1} parent=1 // loop_footer
      %s31 = sadd.s32 1, %s27
    $region7: #{tpu_custom_call.1} parent=1 // loop_footer_branch
      %26 = sbr.rel target = $region3
    $region8: #{tpu_custom_call.1} parent=1 // loop_exit
      _
    %485 = vsyncpa [#allocation3], 1
    %s486 = scalar_lea.sflag [#allocation3], 1
    %487 = vsyncpa %s486, 1
    %488 = vsyncpa [#allocation6], 1
    %s489 = scalar_lea.sflag [#allocation6], 1
    %490 = vsyncpa %s489, 1
    %491 = vsyncpa [#allocation4], 1
    %s492 = scalar_lea.sflag [#allocation4], 1
    %493 = vsyncpa %s492, 1
    %494 = vsyncpa [#allocation9], 1
    %s495 = scalar_lea.sflag [#allocation9], 1
    %496 = vsyncpa %s495, 1
    %497 = vsyncpa [#allocation12], 1
    %s498 = scalar_lea.sflag [#allocation12], 1
    %499 = vsyncpa %s498, 1

</llo_original>
